<compile_context>
chip_gen: v7x
topology: tpu7x:2x2x1
jax: 0.10.0
libtpu: 0.0.40
codegen_flags: <defaults>
</compile_context>

<pallas_src>
import functools

import jax
import jax.numpy as jnp
from jax.experimental import pallas as pl
from jax.experimental.pallas import tpu as pltpu


def _token_masking_kernel(ratio_ref, noise_ref, x_ref, tok_ref, o_ref):
    # ratio_ref: SMEM (1,)    float32   -- mask_ratio scalar
    # noise_ref: VMEM (rb, 1) float32   -- per-token uniform noise for this tile
    # x_ref:     VMEM (rb, C)           -- row tile of the flattened tokens
    # tok_ref:   VMEM (1, C)            -- mask token (broadcast over rows)
    # o_ref:     VMEM (rb, C)           -- output tile
    keep = ratio_ref[0] < noise_ref[...]              # (rb, 1) bool, per token
    tok = tok_ref[...].astype(o_ref.dtype)            # (1, C)
    o_ref[...] = jnp.where(keep, x_ref[...], tok)     # broadcast -> (rb, C)


@functools.partial(jax.jit, static_argnames=("training",))
def token_masking(x, mask_token, mask_ratio, key, training=True):
    """Pallas equivalent of TokenMasking.forward.

    x:          (B, L, C)
    mask_token: (C,)
    mask_ratio: scalar float
    key:        jax.random key (replaces torch's implicit RNG state)
    """
    if not training:
        return x

    B, L, C = x.shape
    R = B * L
    dtype = x.dtype

    # Per-token noise, same role as torch.rand((B, L)); strict `<` like torch.
    noise = jax.random.uniform(key, (R, 1), dtype=jnp.float32)

    x2d = x.reshape(R, C)
    tok2d = mask_token.reshape(1, C).astype(dtype)
    ratio_arr = jnp.asarray(mask_ratio, dtype=jnp.float32).reshape(1)

    # Row-tile sizing: ~2 MiB of x per block, rows a multiple of the sublane
    # packing (8 for 32-bit, 16 for bf16), capped at 4096 rows.
    sub = 16 if dtype == jnp.bfloat16 else 8
    itemsize = jnp.dtype(dtype).itemsize
    rows = (2 * 1024 * 1024) // max(1, C * itemsize)
    rows = max(sub, min(rows, 4096))
    rows = (rows // sub) * sub
    row_block = R if R <= rows else rows
    grid = (pl.cdiv(R, row_block),)

    out2d = pl.pallas_call(
        _token_masking_kernel,
        out_shape=jax.ShapeDtypeStruct((R, C), dtype),
        grid=grid,
        in_specs=[
            pl.BlockSpec(memory_space=pltpu.MemorySpace.SMEM),   # mask_ratio
            pl.BlockSpec((row_block, 1), lambda i: (i, 0)),      # per-token noise
            pl.BlockSpec((row_block, C), lambda i: (i, 0)),      # x row tile
            pl.BlockSpec((1, C), lambda i: (0, 0)),              # mask token
        ],
        out_specs=pl.BlockSpec((row_block, C), lambda i: (i, 0)),
        compiler_params=pltpu.CompilerParams(
            dimension_semantics=("parallel",),
            vmem_limit_bytes=32 * 1024 * 1024,   # v7x-safe scoped-VMEM budget
        ),
    )(ratio_arr, noise, x2d, tok2d)

    return out2d.reshape(B, L, C)


if __name__ == "__main__":
    root = jax.random.PRNGKey(0)
    kx, kt, kn = jax.random.split(root, 3)

    B, L, C = 2, 8, 32
    x = jax.random.normal(kx, (B, L, C), dtype=jnp.float32)
    # Deterministic "parameter" init for the mask token (module __init__ takes
    # it as an argument; shape (C,) so it broadcasts over (B, L, C)).
    mask_token = jax.random.normal(kt, (C,), dtype=jnp.float32)
    mask_ratio = 0.5

    out = token_masking(x, mask_token, mask_ratio, kn, training=True)
    out = jax.block_until_ready(out)

    # Reference: identical noise draw -> identical keep mask -> torch semantics.
    noise_ref = jax.random.uniform(kn, (B * L, 1), dtype=jnp.float32).reshape(B, L)
    keep_ref = mask_ratio < noise_ref
    ref = jnp.where(keep_ref[..., None], x, mask_token[None, None, :])
    assert bool(jnp.allclose(out, ref)), "kernel mismatch vs. reference"

    # Every output row is either the original row or the mask token.
    is_orig = jnp.all(out == x, axis=-1)
    is_tok = jnp.all(out == mask_token[None, None, :], axis=-1)
    assert bool(jnp.all(is_orig | is_tok)), "rows must be either kept or masked"

    # Eval mode is a passthrough.
    out_eval = token_masking(x, mask_token, mask_ratio, kn, training=False)
    assert bool(jnp.all(out_eval == x))

    print("KERNEL_OK")
</pallas_src>

<mosaic_0001>
module attributes {stable_mosaic.version = 11 : i64} {
  func.func @_token_masking_kernel(%arg0: i32, %arg1: memref<1xf32, #tpu.memory_space<smem>>, %arg2: memref<16x1xf32, #tpu.memory_space<vmem>>, %arg3: memref<16x32xf32, #tpu.memory_space<vmem>>, %arg4: memref<1x32xf32, #tpu.memory_space<vmem>>, %arg5: memref<16x32xf32, #tpu.memory_space<vmem>>) attributes {dimension_semantics = [#tpu.dimension_semantics<parallel>], iteration_bounds = array<i64: 1>, scalar_prefetch = 0 : i64, scratch_operands = 0 : i64, tpu.core_type = #tpu.core_type<tc>, window_params = [{transform_indices = @transform_0, window_bounds = array<i64: 1>}, {transform_indices = @transform_1, window_bounds = array<i64: 16, 1>}, {transform_indices = @transform_2, window_bounds = array<i64: 16, 32>}, {pipeline_mode = #tpu.pipeline_mode<synchronous>, transform_indices = @transform_3, window_bounds = array<i64: 1, 32>}, {transform_indices = @transform_4, window_bounds = array<i64: 16, 32>}]} {
    %c0 = arith.constant 0 : index
    %0 = memref.load %arg1[%c0] : memref<1xf32, #tpu.memory_space<smem>>
    %c0_0 = arith.constant 0 : index
    %c0_1 = arith.constant 0 : index
    %1 = vector.load %arg2[%c0_0, %c0_1] : memref<16x1xf32, #tpu.memory_space<vmem>>, vector<16x1xf32>
    %2 = vector.broadcast %0 : f32 to vector<16x1xf32>
    %3 = arith.cmpf olt, %2, %1 : vector<16x1xf32>
    %c0_2 = arith.constant 0 : index
    %c0_3 = arith.constant 0 : index
    %4 = vector.load %arg4[%c0_2, %c0_3] : memref<1x32xf32, #tpu.memory_space<vmem>>, vector<1x32xf32>
    %c0_4 = arith.constant 0 : index
    %c0_5 = arith.constant 0 : index
    %5 = vector.load %arg3[%c0_4, %c0_5] : memref<16x32xf32, #tpu.memory_space<vmem>>, vector<16x32xf32>
    %6 = vector.shape_cast %3 : vector<16x1xi1> to vector<16x1xi1>
    %7 = vector.broadcast %6 : vector<16x1xi1> to vector<16x32xi1>
    %8 = vector.shape_cast %4 : vector<1x32xf32> to vector<1x32xf32>
    %9 = vector.broadcast %8 : vector<1x32xf32> to vector<16x32xf32>
    %10 = arith.select %7, %5, %9 : vector<16x32xi1>, vector<16x32xf32>
    %c0_6 = arith.constant 0 : index
    %c0_7 = arith.constant 0 : index
    %11 = vector.load %arg5[%c0_6, %c0_7] : memref<16x32xf32, #tpu.memory_space<vmem>>, vector<16x32xf32>
    tpu.vector_store %arg5[%c0_6, %c0_7], %10 {strides = array<i32>} : memref<16x32xf32, #tpu.memory_space<vmem>>, vector<16x32xf32>,
    return
  }
  func.func @transform_0(%arg0: i32) -> i32 {
    %c0_i32 = arith.constant 0 : i32
    %c0_i32_0 = arith.constant 0 : i32
    return %c0_i32 : i32
  }
  func.func @transform_1(%arg0: i32) -> (i32, i32) {
    %c0_i32 = arith.constant 0 : i32
    %c0_i32_0 = arith.constant 0 : i32
    return %arg0, %c0_i32 : i32, i32
  }
  func.func @transform_2(%arg0: i32) -> (i32, i32) {
    %c0_i32 = arith.constant 0 : i32
    %c0_i32_0 = arith.constant 0 : i32
    return %arg0, %c0_i32 : i32, i32
  }
  func.func @transform_3(%arg0: i32) -> (i32, i32) {
    %c0_i32 = arith.constant 0 : i32
    %c0_i32_0 = arith.constant 0 : i32
    %c0_i32_1 = arith.constant 0 : i32
    return %c0_i32, %c0_i32_0 : i32, i32
  }
  func.func @transform_4(%arg0: i32) -> (i32, i32) {
    %c0_i32 = arith.constant 0 : i32
    %c0_i32_0 = arith.constant 0 : i32
    return %arg0, %c0_i32 : i32, i32
  }
}

</mosaic_0001>

<llo_original>
// kernel: token_masking.1
$region0: #{token_masking.1}
  #allocation0 [shape = 'u32[]', space=smem, size = 0x4, offset = 0x4, fixed_abs, tag = 'smem constant byte address 0x4 - core index']
  #allocation1 [shape = 'u32[144,128]{1,0:T(1,128)}', space=vmem, size = 0x12000, scoped, tag = 'internal scratch']
  #allocation2 [shape = 'f32[1]{0:T(128)S(6)}', space=smem, size = 0x200, scoped, tag = 'scoped memory for token_masking.1']
  %s0 = inlined_call_operand.<no memory space> [shape: f32[1], index: 0, kind: input, shape index: {}]
  %s1 = inlined_call_operand.vmem [shape: f32[16,1], index: 1, kind: input, shape index: {}]
  %s2 = inlined_call_operand.vmem [shape: f32[16,32], index: 2, kind: input, shape index: {}]
  %s3 = inlined_call_operand.vmem [shape: f32[1,32], index: 3, kind: input, shape index: {}]
  %s4 = inlined_call_operand.hbm [shape: f32[16,32], index: 4, kind: output, shape index: {}]
  %s5 = sld [smem:[#allocation0]]
  $region26: #{token_masking.1} parent=0
    _
  %s7 = ssub.s32 1, %s5
  %s8 = scalar_select 0, %s7, %s5
  %9 = sst [smem:[#allocation2]] %s0
  $region1: #{token_masking.1} parent=0
    #allocation3 [shape = 'u8[8192]{0}', space=vmem, size = 0x2000, scoped, tag = 'output window, operand 0, single buffered']
    #allocation4 [shape = 's32[1]{0}', space=sflag, size = 0x4, scoped, tag = 'scoped memory for token_masking.1']
    %10 = vsyncpa [#allocation4], 0
    // Predicated region
    $region2: #{token_masking.1} parent=1 // pred_check
      _
    $region3: #{token_masking.1} parent=1 // pred_check_branch
      %12 = sbr.rel (0) target = $region5
    $region4: #{token_masking.1} parent=1 // pred_region
      _
    $region5: #{token_masking.1} parent=1 // pred_fallthru
      _
    // Predicated region
    $region6: #{token_masking.1} parent=1 // pred_check
      _
    $region7: #{token_masking.1} parent=1 // pred_check_branch
      %14 = sbr.rel (0) target = $region9
    $region8: #{token_masking.1} parent=1 // pred_region
      _
    $region9: #{token_masking.1} parent=1 // pred_fallthru
      _
    // Predicated region
    $region10: #{token_masking.1} parent=1 // pred_check
      _
    $region11: #{token_masking.1} parent=1 // pred_check_branch
      %16 = sbr.rel (0) target = $region13
    $region12: #{token_masking.1} parent=1 // pred_region
      _
    $region13: #{token_masking.1} parent=1 // pred_fallthru
      _
    // Predicated region
    $region14: #{token_masking.1} parent=1 // pred_check
      _
    $region15: #{token_masking.1} parent=1 // pred_check_branch
      %18 = sbr.rel (0) target = $region17
    $region16: #{token_masking.1} parent=1 // pred_region
      _
    $region17: #{token_masking.1} parent=1 // pred_fallthru
      _
    %s19 = sld [smem:[#allocation2]]
    %v20 = vld [vmem:[%s1] sm:$0xff]
    %v21 = vld [vmem:[%s1 + $0x8] sm:$0xff]
    %v22 = vstv %s19
    %vm23 = vcmp.lt.f32.partialorder %v22, %v20
    %vm24 = vcmp.lt.f32.partialorder %v22, %v21
    %v25 = vld [vmem:[%s3] sm:$0x1]
    %v26 = vld [vmem:[%s2] sm:$0xff]
    %v27 = vld [vmem:[%s2 + $0x8] sm:$0xff]
    %v28 = vsel %vm23, 1, 0
    %v29 = vsel %vm24, 1, 0
    %30 = vset.pattern.permute.xlu0 0
    %31 = vperm.xlu0 %30, %v28
    %v32 = vpop.permute.xlu0 %31
    %33 = vset.pattern.permute.xlu0 0
    %34 = vperm.xlu0 %33, %v29
    %v35 = vpop.permute.xlu0 %34
    %vm36 = vcmp.eq.s32.totalorder %v32, 1
    %vm37 = vcmp.eq.s32.totalorder %v35, 1
    %v39 = vlaneseq
    %v40 = vshrl.u32 %v39, 7
    %v41 = vsub.s32 0, %v40
    %v42 = vrot.slane %v25, %v41
    %v44 = vsel %vm36, %v26, %v42
    %v45 = vsel %vm37, %v27, %v42
    %vm46 = vcmask 261120
    %47 = vst.msk [vmem:[#allocation3] sm:$0xff] %vm46, %v44
    %48 = vst.msk [vmem:[#allocation3 + $0x8] sm:$0xff] %vm46, %v45
    // Predicated region
    $region18: #{token_masking.1} parent=1 // pred_check
      _
    $region19: #{token_masking.1} parent=1 // pred_check_branch
      %50 = sbr.rel (0) target = $region21
    $region20: #{token_masking.1} parent=1 // pred_region
      %s52 = ssub.s32 256, 256
      %53 = vsyncadd [#allocation4], %s52
      %s54 = sshll.u32 [#allocation3], 4
      %s55 = int_to_ptr.vmem [resolvable:$true] %s54
      %60 = dma.vmem_to_hbm [thread:$0]  %s55, 256, %s4, [#allocation4], 128, 128, 8
    $region21: #{token_masking.1} parent=1 // pred_fallthru
      _
    // Predicated region
    $region22: #{token_masking.1} parent=1 // pred_check
      _
    $region23: #{token_masking.1} parent=1 // pred_check_branch
      %62 = sbr.rel (0) target = $region25
    $region24: #{token_masking.1} parent=1 // pred_region
      %63 = dma.done [#allocation4], 256
    $region25: #{token_masking.1} parent=1 // pred_fallthru
      _
    %64 = vsyncpa [#allocation4], 1

</llo_original>
